<compile_context>
chip_gen: v7x
topology: tpu7x:2x2x1
jax: 0.10.0
libtpu: 0.0.40
codegen_flags: <defaults>
</compile_context>

<pallas_src>
import jax
import jax.numpy as jnp
from jax.experimental import pallas as pl
from jax.experimental.pallas import tpu as pltpu

NUM_HEROES = 128   # hero one-hot / draft feature width (hero_encoder input)
OUT_SIZE   = 32    # hero_encoder.out_size
ROLE_COUNT = 9     # len(const.ROLES)
LANE       = 128   # lane-dense padded weight width
BATCH      = 8


def prepare_params(w_enc, w_dec):
    """One-time parameter prep (NOT on the per-forward hot path).

    w_enc: (OUT_SIZE, NUM_HEROES)  torch nn.Linear layout (out, in)
    w_dec: (ROLE_COUNT, OUT_SIZE)  torch nn.Linear layout (out, in)
    Returns W_fused_padded: (NUM_HEROES, LANE) with columns >= ROLE_COUNT zero.
    """
    w_fused = w_enc.T.astype(jnp.float32) @ w_dec.T.astype(jnp.float32)  # (128, 9)
    w_padded = jnp.zeros((NUM_HEROES, LANE), dtype=jnp.float32)
    return w_padded.at[:, :ROLE_COUNT].set(w_fused)


def hero_role_kernel(x_ref, w_ref, out_ref):
    # x_ref:   (tm, NUM_HEROES)    VMEM
    # w_ref:   (NUM_HEROES, LANE)  VMEM (fused + zero-padded weights, resident)
    # out_ref: (tm, ROLE_COUNT)    VMEM (narrow, unpadded output)
    acc = jnp.dot(x_ref[...], w_ref[...], preferred_element_type=jnp.float32)
    out_ref[...] = acc[:, :ROLE_COUNT]


def hero_role_forward(x, w_fused_padded, *, tm=1024):
    """x: (B, NUM_HEROES) float32; w_fused_padded: (NUM_HEROES, LANE) from prepare_params."""
    b = x.shape[0]
    # Cap the row tile so per-step buffers stay in the low-MiB range on every
    # generation (v5e 16 MiB scoped default, v7x 64 MiB physical VMEM).
    tm = min(tm, 2048)

    if b <= tm:
        # Tiny-batch path: single invocation, no grid, full-array VMEM blocks,
        # narrow (b, ROLE_COUNT) output written directly by the kernel.
        return pl.pallas_call(
            hero_role_kernel,
            out_shape=jax.ShapeDtypeStruct((b, ROLE_COUNT), jnp.float32),
            in_specs=[
                pl.BlockSpec(memory_space=pltpu.MemorySpace.VMEM),
                pl.BlockSpec(memory_space=pltpu.MemorySpace.VMEM),
            ],
            out_specs=pl.BlockSpec(memory_space=pltpu.MemorySpace.VMEM),
        )(x, w_fused_padded)

    # Large-batch path: tile the batch axis with cdiv grid (Pallas handles the
    # partial tail block — no jnp.pad copy of x), weights resident across steps.
    grid = (pl.cdiv(b, tm),)
    cost = pl.CostEstimate(
        flops=2 * b * NUM_HEROES * LANE,
        transcendentals=0,
        bytes_accessed=b * (NUM_HEROES + ROLE_COUNT) * 4 + NUM_HEROES * LANE * 4,
    )
    return pl.pallas_call(
        hero_role_kernel,
        out_shape=jax.ShapeDtypeStruct((b, ROLE_COUNT), jnp.float32),
        grid=grid,
        in_specs=[
            pl.BlockSpec((tm, NUM_HEROES), lambda i: (i, 0)),
            pl.BlockSpec((NUM_HEROES, LANE), lambda i: (0, 0)),
        ],
        out_specs=pl.BlockSpec((tm, ROLE_COUNT), lambda i: (i, 0)),
        compiler_params=pltpu.CompilerParams(
            dimension_semantics=("parallel",)),
        cost_estimate=cost,
    )(x, w_fused_padded)


if __name__ == "__main__":
    key = jax.random.PRNGKey(0)
    kx, ke, kd, kx2 = jax.random.split(key, 4)

    # Deterministic synthetic parameters (torch nn.Linear weight layout: (out, in)).
    x = jax.random.normal(kx, (BATCH, NUM_HEROES), dtype=jnp.float32)
    w_enc = jax.random.normal(ke, (OUT_SIZE, NUM_HEROES), dtype=jnp.float32) * 0.05
    w_dec = jax.random.normal(kd, (ROLE_COUNT, OUT_SIZE), dtype=jnp.float32) * 0.05

    # One-time parameter prep (fused + padded weights).
    w_fused_padded = prepare_params(w_enc, w_dec)
    jax.block_until_ready(w_fused_padded)

    # --- small-batch path (no grid, narrow output written by the kernel) ---
    out = hero_role_forward(x, w_fused_padded)
    jax.block_until_ready(out)
    ref = (x @ w_enc.T) @ w_dec.T
    assert out.shape == (BATCH, ROLE_COUNT)
    assert jnp.allclose(out, ref, atol=1e-4, rtol=1e-4)

    # --- gridded path: non-multiple batch exercises the partial tail block ---
    x_big = jax.random.normal(kx2, (300, NUM_HEROES), dtype=jnp.float32)
    out_big = hero_role_forward(x_big, w_fused_padded, tm=256)
    jax.block_until_ready(out_big)
    ref_big = (x_big @ w_enc.T) @ w_dec.T
    assert out_big.shape == (300, ROLE_COUNT)
    assert jnp.allclose(out_big, ref_big, atol=1e-4, rtol=1e-4)

    print("KERNEL_OK")
</pallas_src>

<mosaic_0001>
module attributes {stable_mosaic.version = 11 : i64} {
  func.func @hero_role_kernel(%arg0: memref<8x128xf32, #tpu.memory_space<vmem>>, %arg1: memref<128x128xf32, #tpu.memory_space<vmem>>, %arg2: memref<8x9xf32, #tpu.memory_space<vmem>>) attributes {dimension_semantics = [], scalar_prefetch = 0 : i64, scratch_operands = 0 : i64, tpu.core_type = #tpu.core_type<tc>} {
    %c0 = arith.constant 0 : index
    %c0_0 = arith.constant 0 : index
    %0 = vector.load %arg0[%c0, %c0_0] : memref<8x128xf32, #tpu.memory_space<vmem>>, vector<8x128xf32>
    %c0_1 = arith.constant 0 : index
    %c0_2 = arith.constant 0 : index
    %1 = vector.load %arg1[%c0_1, %c0_2] : memref<128x128xf32, #tpu.memory_space<vmem>>, vector<128x128xf32>
    %cst = arith.constant dense<0.000000e+00> : vector<8x128xf32>
    %2 = tpu.matmul %0, %1, %cst {dimension_numbers = #tpu.dot_dimension_numbers<[1], [0], [0], [1], [0, 0, 1, 1], [], []>} : vector<8x128xf32>, vector<128x128xf32>, vector<8x128xf32> -> vector<8x128xf32>
    %3 = vector.extract_strided_slice %2 {offsets = [0, 0], sizes = [8, 9], strides = [1, 1]} : vector<8x128xf32> to vector<8x9xf32>
    %c0_3 = arith.constant 0 : index
    %c0_4 = arith.constant 0 : index
    %4 = vector.load %arg2[%c0_3, %c0_4] : memref<8x9xf32, #tpu.memory_space<vmem>>, vector<8x9xf32>
    tpu.vector_store %arg2[%c0_3, %c0_4], %3 {strides = array<i32>} : memref<8x9xf32, #tpu.memory_space<vmem>>, vector<8x9xf32>,
    return
  }
}

</mosaic_0001>

<llo_original>
// kernel: tpu_custom_call.1
$region0: #{tpu_custom_call.1}
  #allocation0 [shape = 'u32[]', space=smem, size = 0x4, offset = 0x4, fixed_abs, tag = 'smem constant byte address 0x4 - core index']
  #allocation1 [shape = 'u32[144,128]{1,0:T(1,128)}', space=vmem, size = 0x12000, scoped, tag = 'internal scratch']
  %s0 = inlined_call_operand.hbm [shape: f32[8,128], index: 0, kind: input, shape index: {}]
  %s1 = inlined_call_operand.hbm [shape: f32[128,128], index: 1, kind: input, shape index: {}]
  %s2 = inlined_call_operand.hbm [shape: f32[8,9], index: 2, kind: output, shape index: {}]
  %s3 = sld [smem:[#allocation0]]
  $region26: #{tpu_custom_call.1} parent=0
    _
  %s5 = ssub.s32 1, %s3
  %s6 = scalar_select 0, %s5, %s3
  $region1: #{tpu_custom_call.1} parent=0
    #allocation2 [shape = 'u8[4096]{0}', space=vmem, size = 0x1000, scoped, tag = 'input window, operand 0, single buffered']
    #allocation3 [shape = 's32[1]{0}', space=sflag, size = 0x4, scoped, tag = 'scoped memory for tpu_custom_call.1']
    #allocation4 [shape = 's32[1]{0}', space=sflag, size = 0x4, scoped, tag = 'scoped memory for tpu_custom_call.1']
    #allocation5 [shape = 'u8[65536]{0}', space=vmem, size = 0x10000, scoped, tag = 'input window, operand 1, single buffered']
    #allocation6 [shape = 's32[1]{0}', space=sflag, size = 0x4, scoped, tag = 'scoped memory for tpu_custom_call.1']
    #allocation7 [shape = 'u8[4096]{0}', space=vmem, size = 0x1000, scoped, tag = 'output window, operand 0, single buffered']
    %7 = vsyncpa [#allocation3], 0
    %8 = vsyncpa [#allocation6], 0
    %9 = vsyncpa [#allocation4], 0
    // Predicated region
    $region2: #{tpu_custom_call.1} parent=1 // pred_check
      _
    $region3: #{tpu_custom_call.1} parent=1 // pred_check_branch
      %11 = sbr.rel (0) target = $region5
    $region4: #{tpu_custom_call.1} parent=1 // pred_region
      %s13 = ssub.s32 128, 128
      %14 = vsyncadd [#allocation3], %s13
      %s16 = sshll.u32 [#allocation2], 4
      %s17 = int_to_ptr.vmem [resolvable:$true] %s16
      %19 = dma.hbm_to_vmem [thread:$0]  %s0, 128, %s17, [#allocation3]
    $region5: #{tpu_custom_call.1} parent=1 // pred_fallthru
      _
    // Predicated region
    $region6: #{tpu_custom_call.1} parent=1 // pred_check
      _
    $region7: #{tpu_custom_call.1} parent=1 // pred_check_branch
      %21 = sbr.rel (0) target = $region9
    $region8: #{tpu_custom_call.1} parent=1 // pred_region
      %s23 = ssub.s32 2048, 2048
      %24 = vsyncadd [#allocation6], %s23
      %s25 = sshll.u32 [#allocation5], 4
      %s26 = int_to_ptr.vmem [resolvable:$true] %s25
      %31 = dma.hbm_to_vmem [thread:$0]  %s1, 2048, %s26, [#allocation6], 128, 128, 8
    $region9: #{tpu_custom_call.1} parent=1 // pred_fallthru
      _
    // Predicated region
    $region10: #{tpu_custom_call.1} parent=1 // pred_check
      _
    $region11: #{tpu_custom_call.1} parent=1 // pred_check_branch
      %33 = sbr.rel (0) target = $region13
    $region12: #{tpu_custom_call.1} parent=1 // pred_region
      %34 = dma.done [#allocation3], 128
    $region13: #{tpu_custom_call.1} parent=1 // pred_fallthru
      _
    // Predicated region
    $region14: #{tpu_custom_call.1} parent=1 // pred_check
      _
    $region15: #{tpu_custom_call.1} parent=1 // pred_check_branch
      %36 = sbr.rel (0) target = $region17
    $region16: #{tpu_custom_call.1} parent=1 // pred_region
      %37 = dma.done [#allocation6], 2048
    $region17: #{tpu_custom_call.1} parent=1 // pred_fallthru
      _
    %v38 = vld [vmem:[#allocation2] sm:$0xff]
    %v39 = vld [vmem:[#allocation5] sm:$0xff]
    %v40 = vld [vmem:[#allocation5 + $0x8] sm:$0xff]
    %v41 = vld [vmem:[#allocation5 + $0x10] sm:$0xff]
    %v42 = vld [vmem:[#allocation5 + $0x18] sm:$0xff]
    %v43 = vld [vmem:[#allocation5 + $0x20] sm:$0xff]
    %v44 = vld [vmem:[#allocation5 + $0x28] sm:$0xff]
    %v45 = vld [vmem:[#allocation5 + $0x30] sm:$0xff]
    %v46 = vld [vmem:[#allocation5 + $0x38] sm:$0xff]
    %v47 = vld [vmem:[#allocation5 + $0x40] sm:$0xff]
    %v48 = vld [vmem:[#allocation5 + $0x48] sm:$0xff]
    %v49 = vld [vmem:[#allocation5 + $0x50] sm:$0xff]
    %v50 = vld [vmem:[#allocation5 + $0x58] sm:$0xff]
    %v51 = vld [vmem:[#allocation5 + $0x60] sm:$0xff]
    %v52 = vld [vmem:[#allocation5 + $0x68] sm:$0xff]
    %v53 = vld [vmem:[#allocation5 + $0x70] sm:$0xff]
    %v54 = vld [vmem:[#allocation5 + $0x78] sm:$0xff]
    %55 = vmatprep.subr.mxu0 0.0
    %56 = vmatpush1.msra.mxu0 %v39
    %57 = vmatprep.subr.mxu0 0.0
    %58 = vmatpush1.msra.mxu0 %v40
    %59 = vmatprep.subr.mxu0 0.0
    %60 = vmatpush1.msra.mxu0 %v41
    %61 = vmatprep.subr.mxu0 0.0
    %62 = vmatpush1.msra.mxu0 %v42
    %63 = vmatprep.subr.mxu0 0.0
    %64 = vmatpush1.msra.mxu0 %v43
    %65 = vmatprep.subr.mxu0 0.0
    %66 = vmatpush1.msra.mxu0 %v44
    %67 = vmatprep.subr.mxu0 0.0
    %68 = vmatpush1.msra.mxu0 %v45
    %69 = vmatprep.subr.mxu0 0.0
    %70 = vmatpush1.msra.mxu0 %v46
    %71 = vmatprep.subr.mxu0 0.0
    %72 = vmatpush1.msra.mxu0 %v47
    %73 = vmatprep.subr.mxu0 0.0
    %74 = vmatpush1.msra.mxu0 %v48
    %75 = vmatprep.subr.mxu0 0.0
    %76 = vmatpush1.msra.mxu0 %v49
    %77 = vmatprep.subr.mxu0 0.0
    %78 = vmatpush1.msra.mxu0 %v50
    %79 = vmatprep.subr.mxu0 0.0
    %80 = vmatpush1.msra.mxu0 %v51
    %81 = vmatprep.subr.mxu0 0.0
    %82 = vmatpush1.msra.mxu0 %v52
    %83 = vmatprep.subr.mxu0 0.0
    %84 = vmatpush1.msra.mxu0 %v53
    %85 = vmatprep.subr.mxu0 0.0
    %86 = vmatpush1.msra.mxu0 %v54
    %87 = vmatprep.subr.mxu0 0.0
    %88 = vmatpush1.msra.mxu0 0.0
    %89 = vmatprep.subr.mxu0 0.0
    %90 = vmatpush1.msra.mxu0 0.0
    %91 = vmatprep.subr.mxu0 0.0
    %92 = vmatpush1.msra.mxu0 0.0
    %93 = vmatprep.subr.mxu0 0.0
    %94 = vmatpush1.msra.mxu0 0.0
    %95 = vmatprep.subr.mxu0 0.0
    %96 = vmatpush1.msra.mxu0 0.0
    %97 = vmatprep.subr.mxu0 0.0
    %98 = vmatpush1.msra.mxu0 0.0
    %99 = vmatprep.subr.mxu0 0.0
    %100 = vmatpush1.msra.mxu0 0.0
    %101 = vmatprep.subr.mxu0 0.0
    %102 = vmatpush1.msra.mxu0 0.0
    %103 = vmatprep.subr.mxu0 0.0
    %104 = vmatpush1.msra.mxu0 0.0
    %105 = vmatprep.subr.mxu0 0.0
    %106 = vmatpush1.msra.mxu0 0.0
    %107 = vmatprep.subr.mxu0 0.0
    %108 = vmatpush1.msra.mxu0 0.0
    %109 = vmatprep.subr.mxu0 0.0
    %110 = vmatpush1.msra.mxu0 0.0
    %111 = vmatprep.subr.mxu0 0.0
    %112 = vmatpush1.msra.mxu0 0.0
    %113 = vmatprep.subr.mxu0 0.0
    %114 = vmatpush1.msra.mxu0 0.0
    %115 = vmatprep.subr.mxu0 0.0
    %116 = vmatpush1.msra.mxu0 0.0
    %117 = vmatprep.subr.mxu0 0.0
    %118 = vmatpush1.msra.mxu0 0.0
    %119 = vmatprep.mubr.f32.mxu0 0.0
    %120 = vmatmul.mubr.f32.gmra.mrb[0].mxu0 %v38
    %v121 = vpop.f32.mrb[0].mxu0
    %v122 = vadd.f32 0.0, %v121
    %v123 = vpop.f32.mrb[0].mxu0
    %124 = vdwg.mxu0
    %vm125 = vcmask 72704
    %126 = vst.msk [vmem:[#allocation7] sm:$0xff] %vm125, %v122
    // Predicated region
    $region18: #{tpu_custom_call.1} parent=1 // pred_check
      _
    $region19: #{tpu_custom_call.1} parent=1 // pred_check_branch
      %128 = sbr.rel (0) target = $region21
    $region20: #{tpu_custom_call.1} parent=1 // pred_region
      %s130 = ssub.s32 128, 128
      %131 = vsyncadd [#allocation4], %s130
      %s133 = sshll.u32 [#allocation7], 4
      %s134 = int_to_ptr.vmem [resolvable:$true] %s133
      %136 = dma.vmem_to_hbm [thread:$0]  %s134, 128, %s2, [#allocation4]
    $region21: #{tpu_custom_call.1} parent=1 // pred_fallthru
      _
    // Predicated region
    $region22: #{tpu_custom_call.1} parent=1 // pred_check
      _
    $region23: #{tpu_custom_call.1} parent=1 // pred_check_branch
      %138 = sbr.rel (0) target = $region25
    $region24: #{tpu_custom_call.1} parent=1 // pred_region
      %139 = dma.done [#allocation4], 128
    $region25: #{tpu_custom_call.1} parent=1 // pred_fallthru
      _
    %140 = vsyncpa [#allocation3], 1
    %141 = vsyncpa [#allocation6], 1
    %142 = vsyncpa [#allocation4], 1

</llo_original>
